<compile_context>
chip_gen: v6e
topology: v6e:2x2x1
jax: 0.10.0
libtpu: 0.0.40
codegen_flags: <defaults>
</compile_context>

<pallas_src>
import functools

import jax
import jax.numpy as jnp
from jax.experimental import pallas as pl
from jax.experimental.pallas import tpu as pltpu


def _encoder_head_kernel(seed_ref, b_ref, x_ref, w_ref, o_ref, *,
                         keep_threshold: int, inv_keep: float, training: bool):
    # ReLU on the (synthetic) backbone output.  x: (F_pad, TB) f32.
    x = jnp.maximum(x_ref[...], 0.0)

    # fc1 (400 -> 1) as VPU multiply + cross-sublane reduction.  With N=1 the
    # MXU would be <1% utilized, so we keep it off the critical path entirely.
    # w_ref is (F_pad, 1) and lane-broadcasts over the batch lanes.
    y = jnp.sum(x * w_ref[...], axis=0, keepdims=True)     # (1, TB), lane-dense
    y = y + b_ref[0]                                        # SMEM scalar bias

    if training:
        # Inverted dropout, p = 1 - keep_prob, exact uint32 threshold compare.
        # Mix the grid index into the seed so batch tiles get distinct bits.
        pltpu.prng_seed(seed_ref[0] + pl.program_id(0))
        bits = pltpu.bitcast(pltpu.prng_random_bits(y.shape), jnp.uint32)
        keep = bits < jnp.uint32(keep_threshold)
        y = jnp.where(keep, y * inv_keep, 0.0)
    # (eval mode: dropout is identity, matching nn.Dropout in .eval())

    o_ref[...] = jnp.maximum(y, 0.0)                        # final ReLU, unmasked vst


def encoder_head(features, w, b, *, seed=0, training=False, p=0.25, tb=128):
    """features: (B, 400) f32, w: (1, 400) f32 (= fc1.weight), b: (1,) f32.

    Returns (B, 1) f32, matching the PyTorch module's output shape.
    """
    B, F = features.shape
    F_pad = ((F + 127) // 128) * 128          # 400 -> 512: unmasked lane/sublane tiles
    B_pad = ((B + tb - 1) // tb) * tb         # batch padded to the lane-tile size

    # Transposed + zero-padded operands (zeros contribute nothing after relu*w).
    x_t = jnp.zeros((F_pad, B_pad), jnp.float32).at[:F, :B].set(features.T)
    w_t = jnp.zeros((F_pad, 1), jnp.float32).at[:F, :].set(w.T.astype(jnp.float32))

    keep_prob = 1.0 - p
    keep_threshold = min(int(keep_prob * (1 << 32)), (1 << 32) - 1)
    inv_keep = (1.0 / keep_prob) if keep_prob > 0.0 else 0.0

    kernel = functools.partial(
        _encoder_head_kernel,
        keep_threshold=keep_threshold, inv_keep=inv_keep, training=training)

    out = pl.pallas_call(
        kernel,
        out_shape=jax.ShapeDtypeStruct((1, B_pad), jnp.float32),
        grid=(B_pad // tb,),
        in_specs=[
            pl.BlockSpec(memory_space=pltpu.MemorySpace.SMEM),      # seed scalar
            pl.BlockSpec(memory_space=pltpu.MemorySpace.SMEM),      # fc1 bias scalar
            pl.BlockSpec((F_pad, tb), lambda i: (0, i)),            # features^T tile
            pl.BlockSpec((F_pad, 1), lambda i: (0, 0)),             # fc1 weight column
        ],
        out_specs=pl.BlockSpec((1, tb), lambda i: (0, i)),          # lane-dense output
        compiler_params=pltpu.CompilerParams(
            dimension_semantics=("parallel",)),                     # megacore on v7x
    )(jnp.asarray([seed], jnp.int32),
      b.reshape(1).astype(jnp.float32),
      x_t, w_t)

    # Strip padding, restore the module's (B, 1) output shape.
    return out[0, :B].reshape(B, 1)


if __name__ == "__main__":
    key = jax.random.PRNGKey(0)
    k_vid, k_feat, k_w, k_b = jax.random.split(key, 4)

    # Video input the full module would take (kept small): (B=2, C=3, T=4, H=16, W=16).
    video = jax.random.normal(k_vid, (2, 3, 4, 16, 16), dtype=jnp.float32)
    del video  # TODO(synk): backbone (r2plus1d_r50) not implemented in-kernel.

    # Deterministic stand-in for the 400-d backbone output.
    B, F = 2, 400
    features = jax.random.normal(k_feat, (B, F), dtype=jnp.float32)

    # Deterministic fc1 parameters (Linear(400, 1)): weight (1, 400), bias (1,).
    w = jax.random.normal(k_w, (1, F), dtype=jnp.float32) * 0.05
    b = jax.random.normal(k_b, (1,), dtype=jnp.float32) * 0.05

    # Run the Pallas kernel in eval mode (dropout == identity).
    out = encoder_head(features, w, b, seed=0, training=False, p=0.25)
    out = jax.block_until_ready(out)

    # Pure-JAX reference of the same (eval-mode) head.
    ref = jnp.maximum(jnp.maximum(features, 0.0) @ w.T + b, 0.0)
    assert out.shape == (B, 1)
    assert jnp.allclose(out, ref, atol=1e-4, rtol=1e-4), (out, ref)

    print("KERNEL_OK")
</pallas_src>

<mosaic_0001>
module attributes {stable_mosaic.version = 11 : i64} {
  func.func @_encoder_head_kernel(%arg0: i32, %arg1: memref<1xi32, #tpu.memory_space<smem>>, %arg2: memref<1xf32, #tpu.memory_space<smem>>, %arg3: memref<512x128xf32, #tpu.memory_space<vmem>>, %arg4: memref<512x1xf32, #tpu.memory_space<vmem>>, %arg5: memref<1x128xf32, #tpu.memory_space<vmem>>) attributes {dimension_semantics = [#tpu.dimension_semantics<parallel>], iteration_bounds = array<i64: 1>, scalar_prefetch = 0 : i64, scratch_operands = 0 : i64, tpu.core_type = #tpu.core_type<tc>, window_params = [{transform_indices = @transform_0, window_bounds = array<i64: 1>}, {transform_indices = @transform_1, window_bounds = array<i64: 1>}, {transform_indices = @transform_2, window_bounds = array<i64: 512, 128>}, {pipeline_mode = #tpu.pipeline_mode<synchronous>, transform_indices = @transform_3, window_bounds = array<i64: 512, 1>}, {transform_indices = @transform_4, window_bounds = array<i64: 1, 128>}]} {
    %c0 = arith.constant 0 : index
    %c0_0 = arith.constant 0 : index
    %0 = vector.load %arg3[%c0, %c0_0] : memref<512x128xf32, #tpu.memory_space<vmem>>, vector<512x128xf32>
    %cst = arith.constant 0.000000e+00 : f32
    %1 = vector.broadcast %cst : f32 to vector<512x128xf32>
    %2 = arith.maximumf %0, %1 : vector<512x128xf32>
    %c0_1 = arith.constant 0 : index
    %c0_2 = arith.constant 0 : index
    %3 = vector.load %arg4[%c0_1, %c0_2] : memref<512x1xf32, #tpu.memory_space<vmem>>, vector<512x1xf32>
    %4 = vector.broadcast %3 : vector<512x1xf32> to vector<512x128xf32>
    %5 = arith.mulf %2, %4 : vector<512x128xf32>
    %cst_3 = arith.constant dense<0.000000e+00> : vector<128xf32>
    %6 = vector.multi_reduction <add>, %5, %cst_3 [0] : vector<512x128xf32> to vector<128xf32>
    %7 = vector.shape_cast %6 : vector<128xf32> to vector<1x128xf32>
    %c0_4 = arith.constant 0 : index
    %8 = memref.load %arg2[%c0_4] : memref<1xf32, #tpu.memory_space<smem>>
    %9 = vector.broadcast %8 : f32 to vector<1x128xf32>
    %10 = arith.addf %7, %9 : vector<1x128xf32>
    %cst_5 = arith.constant 0.000000e+00 : f32
    %11 = vector.broadcast %cst_5 : f32 to vector<1x128xf32>
    %12 = arith.maximumf %10, %11 : vector<1x128xf32>
    %c0_6 = arith.constant 0 : index
    %c0_7 = arith.constant 0 : index
    %13 = vector.load %arg5[%c0_6, %c0_7] : memref<1x128xf32, #tpu.memory_space<vmem>>, vector<1x128xf32>
    tpu.vector_store %arg5[%c0_6, %c0_7], %12 {strides = array<i32>} : memref<1x128xf32, #tpu.memory_space<vmem>>, vector<1x128xf32>,
    return
  }
  func.func @transform_0(%arg0: i32) -> i32 {
    %c0_i32 = arith.constant 0 : i32
    %c0_i32_0 = arith.constant 0 : i32
    return %c0_i32 : i32
  }
  func.func @transform_1(%arg0: i32) -> i32 {
    %c0_i32 = arith.constant 0 : i32
    %c0_i32_0 = arith.constant 0 : i32
    return %c0_i32 : i32
  }
  func.func @transform_2(%arg0: i32) -> (i32, i32) {
    %c0_i32 = arith.constant 0 : i32
    %c0_i32_0 = arith.constant 0 : i32
    return %c0_i32, %arg0 : i32, i32
  }
  func.func @transform_3(%arg0: i32) -> (i32, i32) {
    %c0_i32 = arith.constant 0 : i32
    %c0_i32_0 = arith.constant 0 : i32
    %c0_i32_1 = arith.constant 0 : i32
    return %c0_i32, %c0_i32_0 : i32, i32
  }
  func.func @transform_4(%arg0: i32) -> (i32, i32) {
    %c0_i32 = arith.constant 0 : i32
    %c0_i32_0 = arith.constant 0 : i32
    return %c0_i32, %arg0 : i32, i32
  }
}

</mosaic_0001>

<llo_original>
// kernel: tpu_custom_call.1
$region0: #{tpu_custom_call.1}
  #allocation0 [shape = 'u32[]', space=smem, size = 0x4, offset = 0x4, fixed_abs, tag = 'smem constant byte address 0x4 - core index']
  #allocation1 [shape = 'u32[144,128]{1,0:T(1,128)}', space=vmem, size = 0x12000, scoped, tag = 'internal scratch']
  #allocation2 [shape = 's32[1]{0:T(128)S(6)}', space=smem, size = 0x200, scoped, tag = 'scoped memory for tpu_custom_call.1']
  #allocation3 [shape = 'f32[1]{0:T(128)S(6)}', space=smem, size = 0x200, scoped, tag = 'scoped memory for tpu_custom_call.1']
  %s0 = inlined_call_operand.<no memory space> [shape: s32[1], index: 0, kind: input, shape index: {}]
  %s1 = inlined_call_operand.<no memory space> [shape: f32[1], index: 1, kind: input, shape index: {}]
  %s2 = inlined_call_operand.vmem [shape: f32[512,128], index: 2, kind: input, shape index: {}]
  %s3 = inlined_call_operand.vmem [shape: f32[512,1], index: 3, kind: input, shape index: {}]
  %s4 = inlined_call_operand.hbm [shape: f32[1,128], index: 4, kind: output, shape index: {}]
  %s5 = sld [smem:[#allocation0]]
  $region26: #{tpu_custom_call.1} parent=0
    _
  %s7 = ssub.s32 1, %s5
  %s8 = scalar_select 0, %s7, %s5
  %9 = sst [smem:[#allocation2]] %s0
  %10 = sst [smem:[#allocation3]] %s1
  $region1: #{tpu_custom_call.1} parent=0
    #allocation4 [shape = 'u8[512]{0}', space=vmem, size = 0x400, scoped, tag = 'output window, operand 0, single buffered']
    #allocation5 [shape = 's32[1]{0}', space=sflag, size = 0x4, scoped, tag = 'scoped memory for tpu_custom_call.1']
    %11 = vsyncpa [#allocation5], 0
    // Predicated region
    $region2: #{tpu_custom_call.1} parent=1 // pred_check
      _
    $region3: #{tpu_custom_call.1} parent=1 // pred_check_branch
      %13 = sbr.rel (0) target = $region5
    $region4: #{tpu_custom_call.1} parent=1 // pred_region
      _
    $region5: #{tpu_custom_call.1} parent=1 // pred_fallthru
      _
    // Predicated region
    $region6: #{tpu_custom_call.1} parent=1 // pred_check
      _
    $region7: #{tpu_custom_call.1} parent=1 // pred_check_branch
      %15 = sbr.rel (0) target = $region9
    $region8: #{tpu_custom_call.1} parent=1 // pred_region
      _
    $region9: #{tpu_custom_call.1} parent=1 // pred_fallthru
      _
    // Predicated region
    $region10: #{tpu_custom_call.1} parent=1 // pred_check
      _
    $region11: #{tpu_custom_call.1} parent=1 // pred_check_branch
      %17 = sbr.rel (0) target = $region13
    $region12: #{tpu_custom_call.1} parent=1 // pred_region
      _
    $region13: #{tpu_custom_call.1} parent=1 // pred_fallthru
      _
    // Predicated region
    $region14: #{tpu_custom_call.1} parent=1 // pred_check
      _
    $region15: #{tpu_custom_call.1} parent=1 // pred_check_branch
      %19 = sbr.rel (0) target = $region17
    $region16: #{tpu_custom_call.1} parent=1 // pred_region
      _
    $region17: #{tpu_custom_call.1} parent=1 // pred_fallthru
      _
    %v20 = vld [vmem:[%s2] sm:$0xff]
    %v21 = vld [vmem:[%s2 + $0x8] sm:$0xff]
    %v22 = vld [vmem:[%s2 + $0x10] sm:$0xff]
    %v23 = vld [vmem:[%s2 + $0x18] sm:$0xff]
    %v24 = vld [vmem:[%s2 + $0x20] sm:$0xff]
    %v25 = vld [vmem:[%s2 + $0x28] sm:$0xff]
    %v26 = vld [vmem:[%s2 + $0x30] sm:$0xff]
    %v27 = vld [vmem:[%s2 + $0x38] sm:$0xff]
    %v28 = vld [vmem:[%s2 + $0x40] sm:$0xff]
    %v29 = vld [vmem:[%s2 + $0x48] sm:$0xff]
    %v30 = vld [vmem:[%s2 + $0x50] sm:$0xff]
    %v31 = vld [vmem:[%s2 + $0x58] sm:$0xff]
    %v32 = vld [vmem:[%s2 + $0x60] sm:$0xff]
    %v33 = vld [vmem:[%s2 + $0x68] sm:$0xff]
    %v34 = vld [vmem:[%s2 + $0x70] sm:$0xff]
    %v35 = vld [vmem:[%s2 + $0x78] sm:$0xff]
    %v36 = vld [vmem:[%s2 + $0x80] sm:$0xff]
    %v37 = vld [vmem:[%s2 + $0x88] sm:$0xff]
    %v38 = vld [vmem:[%s2 + $0x90] sm:$0xff]
    %v39 = vld [vmem:[%s2 + $0x98] sm:$0xff]
    %v40 = vld [vmem:[%s2 + $0xa0] sm:$0xff]
    %v41 = vld [vmem:[%s2 + $0xa8] sm:$0xff]
    %v42 = vld [vmem:[%s2 + $0xb0] sm:$0xff]
    %v43 = vld [vmem:[%s2 + $0xb8] sm:$0xff]
    %v44 = vld [vmem:[%s2 + $0xc0] sm:$0xff]
    %v45 = vld [vmem:[%s2 + $0xc8] sm:$0xff]
    %v46 = vld [vmem:[%s2 + $0xd0] sm:$0xff]
    %v47 = vld [vmem:[%s2 + $0xd8] sm:$0xff]
    %v48 = vld [vmem:[%s2 + $0xe0] sm:$0xff]
    %v49 = vld [vmem:[%s2 + $0xe8] sm:$0xff]
    %v50 = vld [vmem:[%s2 + $0xf0] sm:$0xff]
    %v51 = vld [vmem:[%s2 + $0xf8] sm:$0xff]
    %v52 = vld [vmem:[%s2 + $0x100] sm:$0xff]
    %v53 = vld [vmem:[%s2 + $0x108] sm:$0xff]
    %v54 = vld [vmem:[%s2 + $0x110] sm:$0xff]
    %v55 = vld [vmem:[%s2 + $0x118] sm:$0xff]
    %v56 = vld [vmem:[%s2 + $0x120] sm:$0xff]
    %v57 = vld [vmem:[%s2 + $0x128] sm:$0xff]
    %v58 = vld [vmem:[%s2 + $0x130] sm:$0xff]
    %v59 = vld [vmem:[%s2 + $0x138] sm:$0xff]
    %v60 = vld [vmem:[%s2 + $0x140] sm:$0xff]
    %v61 = vld [vmem:[%s2 + $0x148] sm:$0xff]
    %v62 = vld [vmem:[%s2 + $0x150] sm:$0xff]
    %v63 = vld [vmem:[%s2 + $0x158] sm:$0xff]
    %v64 = vld [vmem:[%s2 + $0x160] sm:$0xff]
    %v65 = vld [vmem:[%s2 + $0x168] sm:$0xff]
    %v66 = vld [vmem:[%s2 + $0x170] sm:$0xff]
    %v67 = vld [vmem:[%s2 + $0x178] sm:$0xff]
    %v68 = vld [vmem:[%s2 + $0x180] sm:$0xff]
    %v69 = vld [vmem:[%s2 + $0x188] sm:$0xff]
    %v70 = vld [vmem:[%s2 + $0x190] sm:$0xff]
    %v71 = vld [vmem:[%s2 + $0x198] sm:$0xff]
    %v72 = vld [vmem:[%s2 + $0x1a0] sm:$0xff]
    %v73 = vld [vmem:[%s2 + $0x1a8] sm:$0xff]
    %v74 = vld [vmem:[%s2 + $0x1b0] sm:$0xff]
    %v75 = vld [vmem:[%s2 + $0x1b8] sm:$0xff]
    %v76 = vld [vmem:[%s2 + $0x1c0] sm:$0xff]
    %v77 = vld [vmem:[%s2 + $0x1c8] sm:$0xff]
    %v78 = vld [vmem:[%s2 + $0x1d0] sm:$0xff]
    %v79 = vld [vmem:[%s2 + $0x1d8] sm:$0xff]
    %v80 = vld [vmem:[%s2 + $0x1e0] sm:$0xff]
    %v81 = vld [vmem:[%s2 + $0x1e8] sm:$0xff]
    %v82 = vld [vmem:[%s2 + $0x1f0] sm:$0xff]
    %v83 = vld [vmem:[%s2 + $0x1f8] sm:$0xff]
    %v84 = vmax.f32 %v20, 0.0
    %v85 = vmax.f32 %v21, 0.0
    %v86 = vmax.f32 %v22, 0.0
    %v87 = vmax.f32 %v23, 0.0
    %v88 = vmax.f32 %v24, 0.0
    %v89 = vmax.f32 %v25, 0.0
    %v90 = vmax.f32 %v26, 0.0
    %v91 = vmax.f32 %v27, 0.0
    %v92 = vmax.f32 %v28, 0.0
    %v93 = vmax.f32 %v29, 0.0
    %v94 = vmax.f32 %v30, 0.0
    %v95 = vmax.f32 %v31, 0.0
    %v96 = vmax.f32 %v32, 0.0
    %v97 = vmax.f32 %v33, 0.0
    %v98 = vmax.f32 %v34, 0.0
    %v99 = vmax.f32 %v35, 0.0
    %v100 = vmax.f32 %v36, 0.0
    %v101 = vmax.f32 %v37, 0.0
    %v102 = vmax.f32 %v38, 0.0
    %v103 = vmax.f32 %v39, 0.0
    %v104 = vmax.f32 %v40, 0.0
    %v105 = vmax.f32 %v41, 0.0
    %v106 = vmax.f32 %v42, 0.0
    %v107 = vmax.f32 %v43, 0.0
    %v108 = vmax.f32 %v44, 0.0
    %v109 = vmax.f32 %v45, 0.0
    %v110 = vmax.f32 %v46, 0.0
    %v111 = vmax.f32 %v47, 0.0
    %v112 = vmax.f32 %v48, 0.0
    %v113 = vmax.f32 %v49, 0.0
    %v114 = vmax.f32 %v50, 0.0
    %v115 = vmax.f32 %v51, 0.0
    %v116 = vmax.f32 %v52, 0.0
    %v117 = vmax.f32 %v53, 0.0
    %v118 = vmax.f32 %v54, 0.0
    %v119 = vmax.f32 %v55, 0.0
    %v120 = vmax.f32 %v56, 0.0
    %v121 = vmax.f32 %v57, 0.0
    %v122 = vmax.f32 %v58, 0.0
    %v123 = vmax.f32 %v59, 0.0
    %v124 = vmax.f32 %v60, 0.0
    %v125 = vmax.f32 %v61, 0.0
    %v126 = vmax.f32 %v62, 0.0
    %v127 = vmax.f32 %v63, 0.0
    %v128 = vmax.f32 %v64, 0.0
    %v129 = vmax.f32 %v65, 0.0
    %v130 = vmax.f32 %v66, 0.0
    %v131 = vmax.f32 %v67, 0.0
    %v132 = vmax.f32 %v68, 0.0
    %v133 = vmax.f32 %v69, 0.0
    %v134 = vmax.f32 %v70, 0.0
    %v135 = vmax.f32 %v71, 0.0
    %v136 = vmax.f32 %v72, 0.0
    %v137 = vmax.f32 %v73, 0.0
    %v138 = vmax.f32 %v74, 0.0
    %v139 = vmax.f32 %v75, 0.0
    %v140 = vmax.f32 %v76, 0.0
    %v141 = vmax.f32 %v77, 0.0
    %v142 = vmax.f32 %v78, 0.0
    %v143 = vmax.f32 %v79, 0.0
    %v144 = vmax.f32 %v80, 0.0
    %v145 = vmax.f32 %v81, 0.0
    %v146 = vmax.f32 %v82, 0.0
    %v147 = vmax.f32 %v83, 0.0
    %v148 = vld [vmem:[%s3] sm:$0xff]
    %v149 = vld [vmem:[%s3 + $0x8] sm:$0xff]
    %v150 = vld [vmem:[%s3 + $0x10] sm:$0xff]
    %v151 = vld [vmem:[%s3 + $0x18] sm:$0xff]
    %v152 = vld [vmem:[%s3 + $0x20] sm:$0xff]
    %v153 = vld [vmem:[%s3 + $0x28] sm:$0xff]
    %v154 = vld [vmem:[%s3 + $0x30] sm:$0xff]
    %v155 = vld [vmem:[%s3 + $0x38] sm:$0xff]
    %v156 = vld [vmem:[%s3 + $0x40] sm:$0xff]
    %v157 = vld [vmem:[%s3 + $0x48] sm:$0xff]
    %v158 = vld [vmem:[%s3 + $0x50] sm:$0xff]
    %v159 = vld [vmem:[%s3 + $0x58] sm:$0xff]
    %v160 = vld [vmem:[%s3 + $0x60] sm:$0xff]
    %v161 = vld [vmem:[%s3 + $0x68] sm:$0xff]
    %v162 = vld [vmem:[%s3 + $0x70] sm:$0xff]
    %v163 = vld [vmem:[%s3 + $0x78] sm:$0xff]
    %v164 = vld [vmem:[%s3 + $0x80] sm:$0xff]
    %v165 = vld [vmem:[%s3 + $0x88] sm:$0xff]
    %v166 = vld [vmem:[%s3 + $0x90] sm:$0xff]
    %v167 = vld [vmem:[%s3 + $0x98] sm:$0xff]
    %v168 = vld [vmem:[%s3 + $0xa0] sm:$0xff]
    %v169 = vld [vmem:[%s3 + $0xa8] sm:$0xff]
    %v170 = vld [vmem:[%s3 + $0xb0] sm:$0xff]
    %v171 = vld [vmem:[%s3 + $0xb8] sm:$0xff]
    %v172 = vld [vmem:[%s3 + $0xc0] sm:$0xff]
    %v173 = vld [vmem:[%s3 + $0xc8] sm:$0xff]
    %v174 = vld [vmem:[%s3 + $0xd0] sm:$0xff]
    %v175 = vld [vmem:[%s3 + $0xd8] sm:$0xff]
    %v176 = vld [vmem:[%s3 + $0xe0] sm:$0xff]
    %v177 = vld [vmem:[%s3 + $0xe8] sm:$0xff]
    %v178 = vld [vmem:[%s3 + $0xf0] sm:$0xff]
    %v179 = vld [vmem:[%s3 + $0xf8] sm:$0xff]
    %v180 = vld [vmem:[%s3 + $0x100] sm:$0xff]
    %v181 = vld [vmem:[%s3 + $0x108] sm:$0xff]
    %v182 = vld [vmem:[%s3 + $0x110] sm:$0xff]
    %v183 = vld [vmem:[%s3 + $0x118] sm:$0xff]
    %v184 = vld [vmem:[%s3 + $0x120] sm:$0xff]
    %v185 = vld [vmem:[%s3 + $0x128] sm:$0xff]
    %v186 = vld [vmem:[%s3 + $0x130] sm:$0xff]
    %v187 = vld [vmem:[%s3 + $0x138] sm:$0xff]
    %v188 = vld [vmem:[%s3 + $0x140] sm:$0xff]
    %v189 = vld [vmem:[%s3 + $0x148] sm:$0xff]
    %v190 = vld [vmem:[%s3 + $0x150] sm:$0xff]
    %v191 = vld [vmem:[%s3 + $0x158] sm:$0xff]
    %v192 = vld [vmem:[%s3 + $0x160] sm:$0xff]
    %v193 = vld [vmem:[%s3 + $0x168] sm:$0xff]
    %v194 = vld [vmem:[%s3 + $0x170] sm:$0xff]
    %v195 = vld [vmem:[%s3 + $0x178] sm:$0xff]
    %v196 = vld [vmem:[%s3 + $0x180] sm:$0xff]
    %v197 = vld [vmem:[%s3 + $0x188] sm:$0xff]
    %v198 = vld [vmem:[%s3 + $0x190] sm:$0xff]
    %v199 = vld [vmem:[%s3 + $0x198] sm:$0xff]
    %v200 = vld [vmem:[%s3 + $0x1a0] sm:$0xff]
    %v201 = vld [vmem:[%s3 + $0x1a8] sm:$0xff]
    %v202 = vld [vmem:[%s3 + $0x1b0] sm:$0xff]
    %v203 = vld [vmem:[%s3 + $0x1b8] sm:$0xff]
    %v204 = vld [vmem:[%s3 + $0x1c0] sm:$0xff]
    %v205 = vld [vmem:[%s3 + $0x1c8] sm:$0xff]
    %v206 = vld [vmem:[%s3 + $0x1d0] sm:$0xff]
    %v207 = vld [vmem:[%s3 + $0x1d8] sm:$0xff]
    %v208 = vld [vmem:[%s3 + $0x1e0] sm:$0xff]
    %v209 = vld [vmem:[%s3 + $0x1e8] sm:$0xff]
    %v210 = vld [vmem:[%s3 + $0x1f0] sm:$0xff]
    %v211 = vld [vmem:[%s3 + $0x1f8] sm:$0xff]
    %213 = vset.pattern.permute.xlu0 0
    %214 = vperm.xlu0 %213, %v148
    %v215 = vpop.permute.xlu0 %214
    %218 = vset.pattern.permute.xlu0 0
    %219 = vperm.xlu0 %218, %v149
    %v220 = vpop.permute.xlu0 %219
    %223 = vset.pattern.permute.xlu0 0
    %224 = vperm.xlu0 %223, %v150
    %v225 = vpop.permute.xlu0 %224
    %228 = vset.pattern.permute.xlu0 0
    %229 = vperm.xlu0 %228, %v151
    %v230 = vpop.permute.xlu0 %229
    %233 = vset.pattern.permute.xlu0 0
    %234 = vperm.xlu0 %233, %v152
    %v235 = vpop.permute.xlu0 %234
    %238 = vset.pattern.permute.xlu0 0
    %239 = vperm.xlu0 %238, %v153
    %v240 = vpop.permute.xlu0 %239
    %243 = vset.pattern.permute.xlu0 0
    %244 = vperm.xlu0 %243, %v154
    %v245 = vpop.permute.xlu0 %244
    %248 = vset.pattern.permute.xlu0 0
    %249 = vperm.xlu0 %248, %v155
    %v250 = vpop.permute.xlu0 %249
    %253 = vset.pattern.permute.xlu0 0
    %254 = vperm.xlu0 %253, %v156
    %v255 = vpop.permute.xlu0 %254
    %258 = vset.pattern.permute.xlu0 0
    %259 = vperm.xlu0 %258, %v157
    %v260 = vpop.permute.xlu0 %259
    %263 = vset.pattern.permute.xlu0 0
    %264 = vperm.xlu0 %263, %v158
    %v265 = vpop.permute.xlu0 %264
    %268 = vset.pattern.permute.xlu0 0
    %269 = vperm.xlu0 %268, %v159
    %v270 = vpop.permute.xlu0 %269
    %273 = vset.pattern.permute.xlu0 0
    %274 = vperm.xlu0 %273, %v160
    %v275 = vpop.permute.xlu0 %274
    %278 = vset.pattern.permute.xlu0 0
    %279 = vperm.xlu0 %278, %v161
    %v280 = vpop.permute.xlu0 %279
    %283 = vset.pattern.permute.xlu0 0
    %284 = vperm.xlu0 %283, %v162
    %v285 = vpop.permute.xlu0 %284
    %288 = vset.pattern.permute.xlu0 0
    %289 = vperm.xlu0 %288, %v163
    %v290 = vpop.permute.xlu0 %289
    %293 = vset.pattern.permute.xlu0 0
    %294 = vperm.xlu0 %293, %v164
    %v295 = vpop.permute.xlu0 %294
    %298 = vset.pattern.permute.xlu0 0
    %299 = vperm.xlu0 %298, %v165
    %v300 = vpop.permute.xlu0 %299
    %303 = vset.pattern.permute.xlu0 0
    %304 = vperm.xlu0 %303, %v166
    %v305 = vpop.permute.xlu0 %304
    %308 = vset.pattern.permute.xlu0 0
    %309 = vperm.xlu0 %308, %v167
    %v310 = vpop.permute.xlu0 %309
    %313 = vset.pattern.permute.xlu0 0
    %314 = vperm.xlu0 %313, %v168
    %v315 = vpop.permute.xlu0 %314
    %318 = vset.pattern.permute.xlu0 0
    %319 = vperm.xlu0 %318, %v169
    %v320 = vpop.permute.xlu0 %319
    %323 = vset.pattern.permute.xlu0 0
    %324 = vperm.xlu0 %323, %v170
    %v325 = vpop.permute.xlu0 %324
    %328 = vset.pattern.permute.xlu0 0
    %329 = vperm.xlu0 %328, %v171
    %v330 = vpop.permute.xlu0 %329
    %333 = vset.pattern.permute.xlu0 0
    %334 = vperm.xlu0 %333, %v172
    %v335 = vpop.permute.xlu0 %334
    %338 = vset.pattern.permute.xlu0 0
    %339 = vperm.xlu0 %338, %v173
    %v340 = vpop.permute.xlu0 %339
    %343 = vset.pattern.permute.xlu0 0
    %344 = vperm.xlu0 %343, %v174
    %v345 = vpop.permute.xlu0 %344
    %348 = vset.pattern.permute.xlu0 0
    %349 = vperm.xlu0 %348, %v175
    %v350 = vpop.permute.xlu0 %349
    %353 = vset.pattern.permute.xlu0 0
    %354 = vperm.xlu0 %353, %v176
    %v355 = vpop.permute.xlu0 %354
    %358 = vset.pattern.permute.xlu0 0
    %359 = vperm.xlu0 %358, %v177
    %v360 = vpop.permute.xlu0 %359
    %363 = vset.pattern.permute.xlu0 0
    %364 = vperm.xlu0 %363, %v178
    %v365 = vpop.permute.xlu0 %364
    %368 = vset.pattern.permute.xlu0 0
    %369 = vperm.xlu0 %368, %v179
    %v370 = vpop.permute.xlu0 %369
    %373 = vset.pattern.permute.xlu0 0
    %374 = vperm.xlu0 %373, %v180
    %v375 = vpop.permute.xlu0 %374
    %378 = vset.pattern.permute.xlu0 0
    %379 = vperm.xlu0 %378, %v181
    %v380 = vpop.permute.xlu0 %379
    %383 = vset.pattern.permute.xlu0 0
    %384 = vperm.xlu0 %383, %v182
    %v385 = vpop.permute.xlu0 %384
    %388 = vset.pattern.permute.xlu0 0
    %389 = vperm.xlu0 %388, %v183
    %v390 = vpop.permute.xlu0 %389
    %393 = vset.pattern.permute.xlu0 0
    %394 = vperm.xlu0 %393, %v184
    %v395 = vpop.permute.xlu0 %394
    %398 = vset.pattern.permute.xlu0 0
    %399 = vperm.xlu0 %398, %v185
    %v400 = vpop.permute.xlu0 %399
    %403 = vset.pattern.permute.xlu0 0
    %404 = vperm.xlu0 %403, %v186
    %v405 = vpop.permute.xlu0 %404
    %408 = vset.pattern.permute.xlu0 0
    %409 = vperm.xlu0 %408, %v187
    %v410 = vpop.permute.xlu0 %409
    %413 = vset.pattern.permute.xlu0 0
    %414 = vperm.xlu0 %413, %v188
    %v415 = vpop.permute.xlu0 %414
    %418 = vset.pattern.permute.xlu0 0
    %419 = vperm.xlu0 %418, %v189
    %v420 = vpop.permute.xlu0 %419
    %423 = vset.pattern.permute.xlu0 0
    %424 = vperm.xlu0 %423, %v190
    %v425 = vpop.permute.xlu0 %424
    %428 = vset.pattern.permute.xlu0 0
    %429 = vperm.xlu0 %428, %v191
    %v430 = vpop.permute.xlu0 %429
    %433 = vset.pattern.permute.xlu0 0
    %434 = vperm.xlu0 %433, %v192
    %v435 = vpop.permute.xlu0 %434
    %438 = vset.pattern.permute.xlu0 0
    %439 = vperm.xlu0 %438, %v193
    %v440 = vpop.permute.xlu0 %439
    %443 = vset.pattern.permute.xlu0 0
    %444 = vperm.xlu0 %443, %v194
    %v445 = vpop.permute.xlu0 %444
    %448 = vset.pattern.permute.xlu0 0
    %449 = vperm.xlu0 %448, %v195
    %v450 = vpop.permute.xlu0 %449
    %453 = vset.pattern.permute.xlu0 0
    %454 = vperm.xlu0 %453, %v196
    %v455 = vpop.permute.xlu0 %454
    %458 = vset.pattern.permute.xlu0 0
    %459 = vperm.xlu0 %458, %v197
    %v460 = vpop.permute.xlu0 %459
    %463 = vset.pattern.permute.xlu0 0
    %464 = vperm.xlu0 %463, %v198
    %v465 = vpop.permute.xlu0 %464
    %468 = vset.pattern.permute.xlu0 0
    %469 = vperm.xlu0 %468, %v199
    %v470 = vpop.permute.xlu0 %469
    %473 = vset.pattern.permute.xlu0 0
    %474 = vperm.xlu0 %473, %v200
    %v475 = vpop.permute.xlu0 %474
    %478 = vset.pattern.permute.xlu0 0
    %479 = vperm.xlu0 %478, %v201
    %v480 = vpop.permute.xlu0 %479
    %483 = vset.pattern.permute.xlu0 0
    %484 = vperm.xlu0 %483, %v202
    %v485 = vpop.permute.xlu0 %484
    %488 = vset.pattern.permute.xlu0 0
    %489 = vperm.xlu0 %488, %v203
    %v490 = vpop.permute.xlu0 %489
    %493 = vset.pattern.permute.xlu0 0
    %494 = vperm.xlu0 %493, %v204
    %v495 = vpop.permute.xlu0 %494
    %498 = vset.pattern.permute.xlu0 0
    %499 = vperm.xlu0 %498, %v205
    %v500 = vpop.permute.xlu0 %499
    %503 = vset.pattern.permute.xlu0 0
    %504 = vperm.xlu0 %503, %v206
    %v505 = vpop.permute.xlu0 %504
    %508 = vset.pattern.permute.xlu0 0
    %509 = vperm.xlu0 %508, %v207
    %v510 = vpop.permute.xlu0 %509
    %513 = vset.pattern.permute.xlu0 0
    %514 = vperm.xlu0 %513, %v208
    %v515 = vpop.permute.xlu0 %514
    %518 = vset.pattern.permute.xlu0 0
    %519 = vperm.xlu0 %518, %v209
    %v520 = vpop.permute.xlu0 %519
    %523 = vset.pattern.permute.xlu0 0
    %524 = vperm.xlu0 %523, %v210
    %v525 = vpop.permute.xlu0 %524
    %528 = vset.pattern.permute.xlu0 0
    %529 = vperm.xlu0 %528, %v211
    %v530 = vpop.permute.xlu0 %529
    %v532 = vmul.f32 %v84, %v215
    %v533 = vmul.f32 %v85, %v220
    %v534 = vmul.f32 %v86, %v225
    %v535 = vmul.f32 %v87, %v230
    %v536 = vmul.f32 %v88, %v235
    %v537 = vmul.f32 %v89, %v240
    %v538 = vmul.f32 %v90, %v245
    %v539 = vmul.f32 %v91, %v250
    %v540 = vmul.f32 %v92, %v255
    %v541 = vmul.f32 %v93, %v260
    %v542 = vmul.f32 %v94, %v265
    %v543 = vmul.f32 %v95, %v270
    %v544 = vmul.f32 %v96, %v275
    %v545 = vmul.f32 %v97, %v280
    %v546 = vmul.f32 %v98, %v285
    %v547 = vmul.f32 %v99, %v290
    %v548 = vmul.f32 %v100, %v295
    %v549 = vmul.f32 %v101, %v300
    %v550 = vmul.f32 %v102, %v305
    %v551 = vmul.f32 %v103, %v310
    %v552 = vmul.f32 %v104, %v315
    %v553 = vmul.f32 %v105, %v320
    %v554 = vmul.f32 %v106, %v325
    %v555 = vmul.f32 %v107, %v330
    %v556 = vmul.f32 %v108, %v335
    %v557 = vmul.f32 %v109, %v340
    %v558 = vmul.f32 %v110, %v345
    %v559 = vmul.f32 %v111, %v350
    %v560 = vmul.f32 %v112, %v355
    %v561 = vmul.f32 %v113, %v360
    %v562 = vmul.f32 %v114, %v365
    %v563 = vmul.f32 %v115, %v370
    %v564 = vmul.f32 %v116, %v375
    %v565 = vmul.f32 %v117, %v380
    %v566 = vmul.f32 %v118, %v385
    %v567 = vmul.f32 %v119, %v390
    %v568 = vmul.f32 %v120, %v395
    %v569 = vmul.f32 %v121, %v400
    %v570 = vmul.f32 %v122, %v405
    %v571 = vmul.f32 %v123, %v410
    %v572 = vmul.f32 %v124, %v415
    %v573 = vmul.f32 %v125, %v420
    %v574 = vmul.f32 %v126, %v425
    %v575 = vmul.f32 %v127, %v430
    %v576 = vmul.f32 %v128, %v435
    %v577 = vmul.f32 %v129, %v440
    %v578 = vmul.f32 %v130, %v445
    %v579 = vmul.f32 %v131, %v450
    %v580 = vmul.f32 %v132, %v455
    %v581 = vmul.f32 %v133, %v460
    %v582 = vmul.f32 %v134, %v465
    %v583 = vmul.f32 %v135, %v470
    %v584 = vmul.f32 %v136, %v475
    %v585 = vmul.f32 %v137, %v480
    %v586 = vmul.f32 %v138, %v485
    %v587 = vmul.f32 %v139, %v490
    %v588 = vmul.f32 %v140, %v495
    %v589 = vmul.f32 %v141, %v500
    %v590 = vmul.f32 %v142, %v505
    %v591 = vmul.f32 %v143, %v510
    %v592 = vmul.f32 %v144, %v515
    %v593 = vmul.f32 %v145, %v520
    %v594 = vmul.f32 %v146, %v525
    %v595 = vmul.f32 %v147, %v530
    %v596 = vadd.f32 %v532, %v533
    %v597 = vadd.f32 %v596, %v534
    %v598 = vadd.f32 %v597, %v535
    %v599 = vadd.f32 %v598, %v536
    %v600 = vadd.f32 %v599, %v537
    %v601 = vadd.f32 %v600, %v538
    %v602 = vadd.f32 %v601, %v539
    %v603 = vadd.f32 %v602, %v540
    %v604 = vadd.f32 %v603, %v541
    %v605 = vadd.f32 %v604, %v542
    %v606 = vadd.f32 %v605, %v543
    %v607 = vadd.f32 %v606, %v544
    %v608 = vadd.f32 %v607, %v545
    %v609 = vadd.f32 %v608, %v546
    %v610 = vadd.f32 %v609, %v547
    %v611 = vadd.f32 %v610, %v548
    %v612 = vadd.f32 %v611, %v549
    %v613 = vadd.f32 %v612, %v550
    %v614 = vadd.f32 %v613, %v551
    %v615 = vadd.f32 %v614, %v552
    %v616 = vadd.f32 %v615, %v553
    %v617 = vadd.f32 %v616, %v554
    %v618 = vadd.f32 %v617, %v555
    %v619 = vadd.f32 %v618, %v556
    %v620 = vadd.f32 %v619, %v557
    %v621 = vadd.f32 %v620, %v558
    %v622 = vadd.f32 %v621, %v559
    %v623 = vadd.f32 %v622, %v560
    %v624 = vadd.f32 %v623, %v561
    %v625 = vadd.f32 %v624, %v562
    %v626 = vadd.f32 %v625, %v563
    %v627 = vadd.f32 %v626, %v564
    %v628 = vadd.f32 %v627, %v565
    %v629 = vadd.f32 %v628, %v566
    %v630 = vadd.f32 %v629, %v567
    %v631 = vadd.f32 %v630, %v568
    %v632 = vadd.f32 %v631, %v569
    %v633 = vadd.f32 %v632, %v570
    %v634 = vadd.f32 %v633, %v571
    %v635 = vadd.f32 %v634, %v572
    %v636 = vadd.f32 %v635, %v573
    %v637 = vadd.f32 %v636, %v574
    %v638 = vadd.f32 %v637, %v575
    %v639 = vadd.f32 %v638, %v576
    %v640 = vadd.f32 %v639, %v577
    %v641 = vadd.f32 %v640, %v578
    %v642 = vadd.f32 %v641, %v579
    %v643 = vadd.f32 %v642, %v580
    %v644 = vadd.f32 %v643, %v581
    %v645 = vadd.f32 %v644, %v582
    %v646 = vadd.f32 %v645, %v583
    %v647 = vadd.f32 %v646, %v584
    %v648 = vadd.f32 %v647, %v585
    %v649 = vadd.f32 %v648, %v586
    %v650 = vadd.f32 %v649, %v587
    %v651 = vadd.f32 %v650, %v588
    %v652 = vadd.f32 %v651, %v589
    %v653 = vadd.f32 %v652, %v590
    %v654 = vadd.f32 %v653, %v591
    %v655 = vadd.f32 %v654, %v592
    %v656 = vadd.f32 %v655, %v593
    %v657 = vadd.f32 %v656, %v594
    %v658 = vadd.f32 %v657, %v595
    %v659 = vrot.slane %v658, 4
    %v660 = vadd.f32 %v658, %v659
    %v661 = vrot.slane %v660, 2
    %v662 = vadd.f32 %v660, %v661
    %v663 = vrot.slane %v662, 1
    %v664 = vadd.f32 %v662, %v663
    %s665 = sld [smem:[#allocation3]]
    %v666 = vstv %s665
    %v667 = vadd.f32 %v664, %v666
    %v668 = vmax.f32 %v667, 0.0
    %669 = vst [vmem:[#allocation4] sm:$0x1] %v668
    // Predicated region
    $region18: #{tpu_custom_call.1} parent=1 // pred_check
      _
    $region19: #{tpu_custom_call.1} parent=1 // pred_check_branch
      %671 = sbr.rel (0) target = $region21
    $region20: #{tpu_custom_call.1} parent=1 // pred_region
      %s673 = ssub.s32 16, 16
      %674 = vsyncadd [#allocation5], %s673
      %s676 = sshll.u32 [#allocation4], 4
      %s677 = int_to_ptr.vmem [resolvable:$true] %s676
      %679 = dma.vmem_to_hbm [thread:$0]  %s677, 16, %s4, [#allocation5]
    $region21: #{tpu_custom_call.1} parent=1 // pred_fallthru
      _
    // Predicated region
    $region22: #{tpu_custom_call.1} parent=1 // pred_check
      _
    $region23: #{tpu_custom_call.1} parent=1 // pred_check_branch
      %681 = sbr.rel (0) target = $region25
    $region24: #{tpu_custom_call.1} parent=1 // pred_region
      %682 = dma.done [#allocation5], 16
    $region25: #{tpu_custom_call.1} parent=1 // pred_fallthru
      _
    %683 = vsyncpa [#allocation5], 1

</llo_original>
